<compile_context>
chip_gen: v5e
topology: v5e:2x2
jax: 0.10.0
libtpu: 0.0.40
codegen_flags: <defaults>
</compile_context>

<pallas_src>
import math
from functools import partial

import jax
import jax.numpy as jnp
from jax import lax
from jax.experimental import pallas as pl
from jax.experimental.pallas import tpu as pltpu


_VMEM_LIMIT_BYTES = 32 * 1024 * 1024  # <= physical VMEM on v5e/v6e/v7x


# -----------------------------------------------------------------------------
# Tiled linear kernel:  out = x @ w + b   (f32 accumulation on the MXU)
# -----------------------------------------------------------------------------
def _linear_kernel(x_ref, w_ref, b_ref, o_ref):
    acc = jnp.dot(x_ref[...], w_ref[...], preferred_element_type=jnp.float32)
    o_ref[...] = (acc + b_ref[...].astype(jnp.float32)).astype(o_ref.dtype)


def _pallas_linear(x2d, w, b2d, *, tm=512, tn=512):
    """x2d (M, K) @ w (K, Nout) + b2d (1, Nout) -> (M, Nout)."""
    M, K = x2d.shape
    Kw, Nout = w.shape
    assert K == Kw
    tm = M if M <= tm else tm          # full (ragged handled by cdiv) or 512
    tn = Nout if Nout <= tn else tn    # lane-dense (multiple of 128) or full
    grid = (pl.cdiv(M, tm), pl.cdiv(Nout, tn))
    return pl.pallas_call(
        _linear_kernel,
        out_shape=jax.ShapeDtypeStruct((M, Nout), x2d.dtype),
        grid_spec=pltpu.PrefetchScalarGridSpec(
            num_scalar_prefetch=0,
            grid=grid,
            in_specs=[
                pl.BlockSpec((tm, K), lambda i, j: (i, 0)),
                pl.BlockSpec((K, tn), lambda i, j: (0, j)),
                pl.BlockSpec((1, tn), lambda i, j: (0, j)),
            ],
            out_specs=pl.BlockSpec((tm, tn), lambda i, j: (i, j)),
        ),
        compiler_params=pltpu.CompilerParams(
            dimension_semantics=("parallel", "parallel"),
            vmem_limit_bytes=_VMEM_LIMIT_BYTES),
    )(x2d, w, b2d)


def _pallas_qkv_proj(x2d, w3, b3, *, tm=512, tn=512):
    """x2d (M, C) @ w3 (3, C, AH) + b3 (3, 1, AH) -> (3, M, AH).

    Producing the stacked (3, M, AH) layout lets the attention kernel index
    q/k/v directly (no reshape/transpose HBM pass).  The inner grid axes (3,
    AH-tiles) reuse the resident x tile, so x is streamed from HBM only once
    per M-tile.
    """
    M, C = x2d.shape
    _, Cw, AH = w3.shape
    assert C == Cw
    tm = M if M <= tm else tm
    tn = AH if AH <= tn else tn
    grid = (pl.cdiv(M, tm), 3, pl.cdiv(AH, tn))
    return pl.pallas_call(
        _linear_kernel,
        out_shape=jax.ShapeDtypeStruct((3, M, AH), x2d.dtype),
        grid_spec=pltpu.PrefetchScalarGridSpec(
            num_scalar_prefetch=0,
            grid=grid,
            in_specs=[
                pl.BlockSpec((tm, C), lambda i, s, j: (i, 0)),
                pl.BlockSpec((None, C, tn), lambda i, s, j: (s, 0, j)),
                pl.BlockSpec((None, 1, tn), lambda i, s, j: (s, 0, j)),
            ],
            out_specs=pl.BlockSpec((None, tm, tn), lambda i, s, j: (s, i, j)),
        ),
        compiler_params=pltpu.CompilerParams(
            dimension_semantics=("parallel", "parallel", "parallel"),
            vmem_limit_bytes=_VMEM_LIMIT_BYTES),
    )(x2d, w3, b3)


# -----------------------------------------------------------------------------
# Fused attention core: softmax(scale * q @ k^T) @ v for a group of heads.
# q_ref: (block_q, Hb*Dh); k_ref / v_ref: (N, Hb*Dh); o_ref: (block_q, Hb*Dh),
# heads packed along the last axis.
# -----------------------------------------------------------------------------
def _attn_core_kernel(q_ref, k_ref, v_ref, o_ref, *, scale, heads_per_block,
                      head_dim):
    for h in range(heads_per_block):
        sl = slice(h * head_dim, (h + 1) * head_dim)
        # Keep operands in the input dtype (bf16 in production) — the MXU
        # accumulates in f32 via preferred_element_type.
        q = q_ref[:, sl] * scale                               # (bq, Dh)
        k = k_ref[:, sl]                                       # (N,  Dh)
        s = lax.dot_general(q, k, (((1,), (1,)), ((), ())),
                            preferred_element_type=jnp.float32)  # (bq, N)
        m = jnp.max(s, axis=-1, keepdims=True)
        p = jnp.exp(s - m)                                     # f32, unnormalized
        denom = jnp.sum(p, axis=-1, keepdims=True)             # (bq, 1)
        pv = jnp.dot(p.astype(v_ref.dtype), v_ref[:, sl],
                     preferred_element_type=jnp.float32)       # (bq, Dh)
        # Deferred normalization: small (bq, Dh) multiply + EUP reciprocal.
        out = pv * pl.reciprocal(denom, approx=True)
        o_ref[:, sl] = out.astype(o_ref.dtype)


def _pick_head_group(H, Dh, N, block_q, itemsize):
    """Largest head-group Hb (divisor of H) with a lane-dense block width
    (Hb*Dh multiple of 128, or Hb == H so the block spans the full AH dim)
    that keeps the per-step VMEM footprint within budget."""
    legal = [hb for hb in range(H, 0, -1)
             if H % hb == 0 and (hb == H or (hb * Dh) % 128 == 0)]
    budget = 10 * 1024 * 1024
    for hb in legal:
        width = hb * Dh
        blocks = 2 * itemsize * (2 * N * width + 2 * block_q * width)  # dbl-buffered q,k,v,o
        transient = 2 * 4 * block_q * N                                # ~2 live f32 score tiles
        if blocks + transient <= budget:
            return hb
    return legal[-1]


def _pallas_attention(qkv, H, Dh, scale):
    """qkv: (3, B, N, AH) with heads packed along AH -> out: (B, N, AH)."""
    three, B, N, AH = qkv.shape
    assert three == 3 and AH == H * Dh
    # TODO(synk): for very long sequences (N >= ~2048) switch to flash-style
    # KV tiling (extra 'arbitrary' grid axis + online-softmax scratch).
    block_q = N if N <= 256 else 256
    Hb = _pick_head_group(H, Dh, N, block_q, jnp.dtype(qkv.dtype).itemsize)
    width = Hb * Dh
    grid = (B, H // Hb, pl.cdiv(N, block_q))
    kernel = partial(_attn_core_kernel, scale=scale,
                     heads_per_block=Hb, head_dim=Dh)
    # q / k / v are column blocks of the same (3, B, N, AH) buffer: leading
    # index 0/1/2 selects q/k/v, last-axis block index selects the head group.
    return pl.pallas_call(
        kernel,
        out_shape=jax.ShapeDtypeStruct((B, N, AH), qkv.dtype),
        grid_spec=pltpu.PrefetchScalarGridSpec(
            num_scalar_prefetch=0,
            grid=grid,
            in_specs=[
                pl.BlockSpec((None, None, block_q, width),
                             lambda b, hg, i: (0, b, i, hg)),
                pl.BlockSpec((None, None, N, width),
                             lambda b, hg, i: (1, b, 0, hg)),
                pl.BlockSpec((None, None, N, width),
                             lambda b, hg, i: (2, b, 0, hg)),
            ],
            out_specs=pl.BlockSpec((None, block_q, width),
                                   lambda b, hg, i: (b, i, hg)),
        ),
        compiler_params=pltpu.CompilerParams(
            dimension_semantics=("parallel", "parallel", "parallel"),
            vmem_limit_bytes=_VMEM_LIMIT_BYTES),
    )(qkv, qkv, qkv)


# -----------------------------------------------------------------------------
# Module wrapper (matches the PyTorch Attention forward, default path)
# -----------------------------------------------------------------------------
class Attention:
    """JAX/Pallas port of the EVA-ViT Attention forward (default path:
    non-subln, non-xattn, no rope, no window relative-position bias,
    attn_drop = proj_drop = 0 in eval)."""

    def __init__(self, dim, num_heads=8, qkv_bias=False, qk_scale=None,
                 attn_drop=0.0, proj_drop=0.0, *, key, dtype=jnp.float32):
        assert dim % num_heads == 0
        head_dim = dim // num_heads
        all_head_dim = head_dim * num_heads
        self.dim = dim
        self.num_heads = num_heads
        self.head_dim = head_dim
        self.all_head_dim = all_head_dim
        self.scale = qk_scale or head_dim ** (-0.5)
        self.attn_drop = attn_drop
        self.proj_drop = proj_drop

        k1, k2, k3, k4, k5 = jax.random.split(key, 5)
        self.w_qkv = (jax.random.normal(k1, (dim, 3 * all_head_dim), dtype)
                      * (1.0 / math.sqrt(dim)))
        # One-time weight re-layout: (C, 3*AH) -> (3, C, AH) so the QKV kernel
        # emits q/k/v as leading-axis slabs (no activation transpose later).
        self.w3_qkv = self.w_qkv.reshape(dim, 3, all_head_dim).transpose(1, 0, 2)
        if qkv_bias:
            self.q_bias = jax.random.normal(k2, (all_head_dim,), dtype) * 0.02
            self.v_bias = jax.random.normal(k3, (all_head_dim,), dtype) * 0.02
        else:
            self.q_bias = None
            self.v_bias = None
        self.w_proj = (jax.random.normal(k4, (all_head_dim, dim), dtype)
                       * (1.0 / math.sqrt(all_head_dim)))
        self.b_proj = jax.random.normal(k5, (dim,), dtype) * 0.02

    def qkv_bias_vec(self, dtype):
        if self.q_bias is None:
            return jnp.zeros((3 * self.all_head_dim,), dtype)
        # PyTorch: cat(q_bias, zeros_like(v_bias), v_bias)
        return jnp.concatenate(
            [self.q_bias, jnp.zeros_like(self.v_bias), self.v_bias]).astype(dtype)

    def __call__(self, x, rel_pos_bias=None, attn_mask=None):
        # TODO(synk): rel_pos_bias / attn_mask / window relative-position bias /
        # rope / xattn / subln (inner LayerNorm) branches are not implemented.
        assert rel_pos_bias is None and attn_mask is None
        B, N, C = x.shape
        H, Dh, AH = self.num_heads, self.head_dim, self.all_head_dim

        # QKV projection straight into (3, B*N, AH) layout.
        b3 = self.qkv_bias_vec(x.dtype).reshape(3, 1, AH)
        qkv = _pallas_qkv_proj(x.reshape(B * N, C),
                               self.w3_qkv.astype(x.dtype), b3)
        qkv = qkv.reshape(3, B, N, AH)                 # free leading-dim reshape

        # Fused scaled-dot-product attention; output already in (B, N, AH).
        o = _pallas_attention(qkv, H, Dh, self.scale)

        # inner_attn_ln is Identity (subln=False); attn_drop/proj_drop are 0.
        out = _pallas_linear(o.reshape(B * N, AH), self.w_proj,
                             self.b_proj.reshape(1, C))
        return out.reshape(B, N, C)


# -----------------------------------------------------------------------------
# Pure-JAX reference for correctness checking
# -----------------------------------------------------------------------------
def _attention_ref(x, w_qkv, qkv_b, w_proj, b_proj, num_heads, scale):
    B, N, C = x.shape
    hp = lax.Precision.HIGHEST
    qkv = jnp.dot(x, w_qkv, precision=hp) + qkv_b
    qkv = qkv.reshape(B, N, 3, num_heads, -1).transpose(2, 0, 3, 1, 4)
    q, k, v = qkv[0], qkv[1], qkv[2]
    q = q * scale
    attn = jnp.einsum('bhnd,bhmd->bhnm', q, k, precision=hp)
    attn = jax.nn.softmax(attn, axis=-1)
    o = jnp.einsum('bhnm,bhmd->bhnd', attn, v, precision=hp)
    o = o.transpose(0, 2, 1, 3).reshape(B, N, -1)
    return jnp.dot(o, w_proj, precision=hp) + b_proj


if __name__ == "__main__":
    # Small shapes: batch=2, seq=16 tokens, dim=64, 2 heads (head_dim=32).
    B, N, dim, num_heads = 2, 16, 64, 2

    key = jax.random.PRNGKey(0)
    k_param, k_x = jax.random.split(key)

    mod = Attention(dim, num_heads=num_heads, qkv_bias=True, key=k_param)
    x = jax.random.normal(k_x, (B, N, dim), dtype=jnp.float32)

    out = mod(x)
    out = jax.block_until_ready(out)

    ref = _attention_ref(x, mod.w_qkv, mod.qkv_bias_vec(x.dtype),
                         mod.w_proj, mod.b_proj, num_heads, mod.scale)

    assert out.shape == ref.shape, (out.shape, ref.shape)
    max_err = float(jnp.max(jnp.abs(out - ref)))
    assert jnp.allclose(out, ref, atol=1e-2, rtol=1e-2), max_err
    print("KERNEL_OK")
</pallas_src>

<mosaic_0001>
module attributes {stable_mosaic.version = 11 : i64} {
  func.func @_linear_kernel(%arg0: i32, %arg1: i32, %arg2: i32, %arg3: memref<32x64xf32, #tpu.memory_space<vmem>>, %arg4: memref<1x64x64xf32, #tpu.memory_space<vmem>>, %arg5: memref<1x1x64xf32, #tpu.memory_space<vmem>>, %arg6: memref<1x32x64xf32, #tpu.memory_space<vmem>>) attributes {dimension_semantics = [#tpu.dimension_semantics<parallel>, #tpu.dimension_semantics<parallel>, #tpu.dimension_semantics<parallel>], iteration_bounds = array<i64: 1, 3, 1>, scalar_prefetch = 0 : i64, scratch_operands = 0 : i64, tpu.core_type = #tpu.core_type<tc>, window_params = [{transform_indices = @transform_0, window_bounds = array<i64: 32, 64>}, {transform_indices = @transform_1, window_bounds = array<i64: 1, 64, 64>}, {transform_indices = @transform_2, window_bounds = array<i64: 1, 1, 64>}, {transform_indices = @transform_3, window_bounds = array<i64: 1, 32, 64>}]} {
    %c0 = arith.constant 0 : index
    %c0_0 = arith.constant 0 : index
    %0 = vector.load %arg3[%c0, %c0_0] : memref<32x64xf32, #tpu.memory_space<vmem>>, vector<32x64xf32>
    %c0_1 = arith.constant 0 : index
    %c0_2 = arith.constant 0 : index
    %c0_3 = arith.constant 0 : index
    %1 = vector.load %arg4[%c0_1, %c0_2, %c0_3] : memref<1x64x64xf32, #tpu.memory_space<vmem>>, vector<1x64x64xf32>
    %2 = vector.shape_cast %1 : vector<1x64x64xf32> to vector<64x64xf32>
    %cst = arith.constant dense<0.000000e+00> : vector<32x64xf32>
    %3 = tpu.matmul %0, %2, %cst {dimension_numbers = #tpu.dot_dimension_numbers<[1], [0], [0], [1], [0, 0, 1, 1], [], []>} : vector<32x64xf32>, vector<64x64xf32>, vector<32x64xf32> -> vector<32x64xf32>
    %c0_4 = arith.constant 0 : index
    %c0_5 = arith.constant 0 : index
    %c0_6 = arith.constant 0 : index
    %4 = vector.load %arg5[%c0_4, %c0_5, %c0_6] : memref<1x1x64xf32, #tpu.memory_space<vmem>>, vector<1x1x64xf32>
    %5 = vector.shape_cast %4 : vector<1x1x64xf32> to vector<1x64xf32>
    %6 = vector.broadcast %5 : vector<1x64xf32> to vector<32x64xf32>
    %7 = arith.addf %3, %6 : vector<32x64xf32>
    %c0_7 = arith.constant 0 : index
    %c0_8 = arith.constant 0 : index
    %c0_9 = arith.constant 0 : index
    %8 = vector.load %arg6[%c0_7, %c0_8, %c0_9] : memref<1x32x64xf32, #tpu.memory_space<vmem>>, vector<1x32x64xf32>
    %9 = vector.shape_cast %8 : vector<1x32x64xf32> to vector<32x64xf32>
    %10 = vector.shape_cast %7 : vector<32x64xf32> to vector<1x32x64xf32>
    tpu.vector_store %arg6[%c0_7, %c0_8, %c0_9], %10 {strides = array<i32>} : memref<1x32x64xf32, #tpu.memory_space<vmem>>, vector<1x32x64xf32>,
    return
  }
  func.func @transform_0(%arg0: i32, %arg1: i32, %arg2: i32) -> (i32, i32) {
    %c0_i32 = arith.constant 0 : i32
    %c0_i32_0 = arith.constant 0 : i32
    return %arg0, %c0_i32 : i32, i32
  }
  func.func @transform_1(%arg0: i32, %arg1: i32, %arg2: i32) -> (i32, i32, i32) {
    %c0_i32 = arith.constant 0 : i32
    %c0_i32_0 = arith.constant 0 : i32
    return %arg1, %c0_i32, %arg2 : i32, i32, i32
  }
  func.func @transform_2(%arg0: i32, %arg1: i32, %arg2: i32) -> (i32, i32, i32) {
    %c0_i32 = arith.constant 0 : i32
    %c0_i32_0 = arith.constant 0 : i32
    return %arg1, %c0_i32, %arg2 : i32, i32, i32
  }
  func.func @transform_3(%arg0: i32, %arg1: i32, %arg2: i32) -> (i32, i32, i32) {
    %c0_i32 = arith.constant 0 : i32
    return %arg1, %arg0, %arg2 : i32, i32, i32
  }
}

</mosaic_0001>

<llo_original>
// kernel: tpu_custom_call.1
$region0: #{tpu_custom_call.1}
  #allocation0 [shape = 'u32[]', space=smem, size = 0x4, offset = 0x4, fixed_abs, tag = 'smem constant byte address 0x4 - core index']
  #allocation1 [shape = 'u32[72,128]{1,0:T(1,128)}', space=vmem, size = 0x9000, scoped, tag = 'internal scratch']
  %s0 = inlined_call_operand.hbm [shape: f32[32,64], index: 0, kind: input, shape index: {}]
  %s1 = inlined_call_operand.hbm [shape: f32[3,64,64], index: 1, kind: input, shape index: {}]
  %s2 = inlined_call_operand.hbm [shape: f32[3,1,64], index: 2, kind: input, shape index: {}]
  %s3 = inlined_call_operand.hbm [shape: f32[3,32,64], index: 3, kind: output, shape index: {}]
  %s4 = sld [smem:[#allocation0]]
  $region57: #{tpu_custom_call.1} parent=0
    _
  %s6 = ssub.s32 1, %s4
  %s7 = scalar_select 0, %s6, %s4
  $region1: #{tpu_custom_call.1} parent=0
    #allocation2 [shape = 'u8[16384]{0}', space=vmem, size = 0x4000, scoped, tag = 'input window, operand 0, single buffered']
    #allocation3 [shape = 's32[2]{0}', space=sflag, size = 0x8, scoped, tag = 'scoped memory for tpu_custom_call.1']
    #allocation4 [shape = 's32[2]{0}', space=sflag, size = 0x8, scoped, tag = 'scoped memory for tpu_custom_call.1']
    #allocation5 [shape = 'u8[65536]{0}', space=vmem, size = 0x10000, scoped, tag = 'input window, operand 1']
    #allocation6 [shape = 's32[2]{0}', space=sflag, size = 0x8, scoped, tag = 'scoped memory for tpu_custom_call.1']
    #allocation7 [shape = 'u8[1024]{0}', space=vmem, size = 0x400, scoped, tag = 'input window, operand 2']
    #allocation8 [shape = 'u8[32768]{0}', space=vmem, size = 0x8000, scoped, tag = 'output window, operand 0']
    %8 = vsyncpa [#allocation3], 0
    %9 = vsyncpa [#allocation6], 0
    %s10 = scalar_lea.sflag [#allocation6], 1
    %11 = vsyncpa %s10, 0
    %12 = vsyncpa [#allocation4], 0
    %s13 = scalar_lea.sflag [#allocation4], 1
    %14 = vsyncpa %s13, 0
    loop: start=0, step=1, limit=5
    $region2: #{tpu_custom_call.1} parent=1 // loop_pre_header
      _
    $region3: #{tpu_custom_call.1} parent=1 // loop_header
      %s16 = sphi 0, %s20
      %p17 = scmp.ge.s32.totalorder %s16, 5
      %s23 = sphi 0, %s42
      %s24 = sphi 0, %s38
      %s25 = sphi 0, %s34
      %s26 = sphi 0, %s23
      %s27 = sphi 0, %s24
      %s28 = sphi 0, %s25
      %s29 = sphi 0, %s26
      %s30 = sphi 0, %s27
      %s31 = sphi 0, %s28
      %s45 = sphi 0, %s47
      %s48 = sphi 0, %s45
      %s49 = sphi 0, %s48
      %s65 = sphi 0, %s49
      %s73 = sphi 0, %s75
      %s76 = sphi 0, %s73
      %s77 = sphi 0, %s76
      %s93 = sphi 0, %s77
      %s101 = sphi 0, %s103
      %s104 = sphi 0, %s101
      %s105 = sphi 0, %s104
      %s121 = sphi 0, %s105
      %s131 = sphi 0, %s133
      %s134 = sphi 0, %s131
      %s135 = sphi 0, %s134
      %s151 = sphi 0, %s135
    $region4: #{tpu_custom_call.1} parent=1 // loop_header_branch
      %19 = sbr.rel (%p17) target = $region8
    $region5: #{tpu_custom_call.1} parent=1 // loop_body
      %s21 = ssub.s32 %s16, 1
      %s22 = ssub.s32 %s16, 2
      %s32 = sadd.s32 1, %s25
      %p33 = scmp.ge.s32.totalorder %s32, 1
      %s34 = scalar_select %p33, 0, %s32
      %s35 = sadd.s32 1, %s24
      %s36 = scalar_select %p33, %s35, %s24
      %p37 = scmp.ge.s32.totalorder %s36, 3
      %s38 = scalar_select %p37, 0, %s36
      %s39 = sadd.s32 1, %s23
      %s40 = scalar_select %p37, %s39, %s23
      %p41 = scmp.ge.s32.totalorder %s40, 1
      %s42 = scalar_select %p41, 0, %s40
      %s43 = ssub.s32 %s23, %s42
      %p44 = scmp.eq.s32.totalorder %s43, 0
      %s46 = sadd.s32 %s45, 1
      %s47 = scalar_select %p44, %s45, %s46
      %p50 = pneg %p44
      %p51 = scmp.eq.s32.totalorder %s16, 2
      %p52 = por %p50, %p51
      %p53 = scmp.ne.s32.totalorder %s45, %s48
      %p54 = scmp.eq.s32.totalorder %s16, 0
      %p55 = por %p53, %p54
      %p56 = scmp.ne.s32.totalorder %s45, %s48
      %p57 = scmp.eq.s32.totalorder %s21, 2
      %p58 = por %p56, %p57
      %p59 = scmp.ne.s32.totalorder %s48, %s49
      %p60 = scmp.eq.s32.totalorder %s21, 0
      %p61 = por %p59, %p60
      %p62 = scmp.ne.s32.totalorder %s48, %s49
      %p63 = scmp.eq.s32.totalorder %s22, 2
      %p64 = por %p62, %p63
      %p66 = scmp.ne.s32.totalorder %s49, %s65
      %p67 = scmp.eq.s32.totalorder %s22, 0
      %p68 = por %p66, %p67
      %s69 = ssub.s32 %s24, %s38
      %s70 = ssub.s32 %s25, %s34
      %s71 = sor.u32 %s69, %s70
      %p72 = scmp.eq.s32.totalorder %s71, 0
      %s74 = sadd.s32 %s73, 1
      %s75 = scalar_select %p72, %s73, %s74
      %p78 = pneg %p72
      %p79 = scmp.eq.s32.totalorder %s16, 2
      %p80 = por %p78, %p79
      %p81 = scmp.ne.s32.totalorder %s73, %s76
      %p82 = scmp.eq.s32.totalorder %s16, 0
      %p83 = por %p81, %p82
      %p84 = scmp.ne.s32.totalorder %s73, %s76
      %p85 = scmp.eq.s32.totalorder %s21, 2
      %p86 = por %p84, %p85
      %p87 = scmp.ne.s32.totalorder %s76, %s77
      %p88 = scmp.eq.s32.totalorder %s21, 0
      %p89 = por %p87, %p88
      %p90 = scmp.ne.s32.totalorder %s76, %s77
      %p91 = scmp.eq.s32.totalorder %s22, 2
      %p92 = por %p90, %p91
      %p94 = scmp.ne.s32.totalorder %s77, %s93
      %p95 = scmp.eq.s32.totalorder %s22, 0
      %p96 = por %p94, %p95
      %s97 = ssub.s32 %s24, %s38
      %s98 = ssub.s32 %s25, %s34
      %s99 = sor.u32 %s97, %s98
      %p100 = scmp.eq.s32.totalorder %s99, 0
      %s102 = sadd.s32 %s101, 1
      %s103 = scalar_select %p100, %s101, %s102
      %p106 = pneg %p100
      %p107 = scmp.eq.s32.totalorder %s16, 2
      %p108 = por %p106, %p107
      %p109 = scmp.ne.s32.totalorder %s101, %s104
      %p110 = scmp.eq.s32.totalorder %s16, 0
      %p111 = por %p109, %p110
      %p112 = scmp.ne.s32.totalorder %s101, %s104
      %p113 = scmp.eq.s32.totalorder %s21, 2
      %p114 = por %p112, %p113
      %p115 = scmp.ne.s32.totalorder %s104, %s105
      %p116 = scmp.eq.s32.totalorder %s21, 0
      %p117 = por %p115, %p116
      %p118 = scmp.ne.s32.totalorder %s104, %s105
      %p119 = scmp.eq.s32.totalorder %s22, 2
      %p120 = por %p118, %p119
      %p122 = scmp.ne.s32.totalorder %s105, %s121
      %p123 = scmp.eq.s32.totalorder %s22, 0
      %p124 = por %p122, %p123
      %s125 = ssub.s32 %s24, %s38
      %s126 = ssub.s32 %s23, %s42
      %s127 = sor.u32 %s125, %s126
      %s128 = ssub.s32 %s25, %s34
      %s129 = sor.u32 %s127, %s128
      %p130 = scmp.eq.s32.totalorder %s129, 0
      %s132 = sadd.s32 %s131, 1
      %s133 = scalar_select %p130, %s131, %s132
      %p136 = pneg %p130
      %p137 = scmp.eq.s32.totalorder %s16, 2
      %p138 = por %p136, %p137
      %p139 = scmp.ne.s32.totalorder %s131, %s134
      %p140 = scmp.eq.s32.totalorder %s16, 0
      %p141 = por %p139, %p140
      %p142 = scmp.ne.s32.totalorder %s131, %s134
      %p143 = scmp.eq.s32.totalorder %s21, 2
      %p144 = por %p142, %p143
      %p145 = scmp.ne.s32.totalorder %s134, %s135
      %p146 = scmp.eq.s32.totalorder %s21, 0
      %p147 = por %p145, %p146
      %p148 = scmp.ne.s32.totalorder %s134, %s135
      %p149 = scmp.eq.s32.totalorder %s22, 2
      %p150 = por %p148, %p149
      %p152 = scmp.ne.s32.totalorder %s135, %s151
      %p153 = scmp.eq.s32.totalorder %s22, 0
      %p154 = por %p152, %p153
      %p155 = scmp.le.s32.totalorder 1, %s16
      %p156 = scmp.lt.s32.totalorder %s16, 4
      %p157 = pnand %p155, %p156
      %p158 = pneg %p157
      // Predicated region
      $region9: #{tpu_custom_call.1} parent=5 // pred_check
        _
      $region10: #{tpu_custom_call.1} parent=5 // pred_check_branch
        %160 = sbr.rel (%p157) target = $region12
      $region11: #{tpu_custom_call.1} parent=5 // pred_region
        %s161 = ssub.s32 %s16, 1
        // Predicated region
        $region13: #{tpu_custom_call.1} parent=11 // pred_check
          %p162 = pneg %p61
        $region14: #{tpu_custom_call.1} parent=11 // pred_check_branch
          %164 = sbr.rel (%p162) target = $region16
        $region15: #{tpu_custom_call.1} parent=11 // pred_region
          %s165 = smul.u32 4, %s26
          %167 = vsyncadd [#allocation3], 0
          %s168 = smul.addr %s165, 8
          %s169 = scalar_lea.hbm %s0, %s168
          %s170 = sshll.u32 %s169, 4
          %s171 = int_to_ptr.hbm [resolvable:$true] %s170
          %s172 = sshll.u32 [#allocation2], 4
          %s173 = int_to_ptr.vmem [resolvable:$true] %s172
          %178 = dma.hbm_to_vmem [thread:$0]  %s171, 512, %s173, [#allocation3], 128, 128, 8
        $region16: #{tpu_custom_call.1} parent=11 // pred_fallthru
          _
      $region12: #{tpu_custom_call.1} parent=5 // pred_fallthru
        _
      %p179 = scmp.lt.s32.totalorder %s16, 3
      // Predicated region
      $region17: #{tpu_custom_call.1} parent=5 // pred_check
        %p180 = pneg %p179
      $region18: #{tpu_custom_call.1} parent=5 // pred_check_branch
        %182 = sbr.rel (%p180) target = $region20
      $region19: #{tpu_custom_call.1} parent=5 // pred_region
        // Predicated region
        $region21: #{tpu_custom_call.1} parent=19 // pred_check
          %p183 = pneg %p83
        $region22: #{tpu_custom_call.1} parent=19 // pred_check_branch
          %185 = sbr.rel (%p183) target = $region24
        $region23: #{tpu_custom_call.1} parent=19 // pred_region
          %s186 = sand.u32 %s16, 1
          %s187 = scalar_lea.sflag [#allocation6], %s186
          %s188 = sand.u32 %s73, 1
          %s189 = smul.addr %s188, 64
          %s190 = scalar_lea.vmem [#allocation5], %s189
          %192 = vsyncadd %s187, 0
          %s193 = smul.addr %s24, 8
          %s194 = sadd.s32 %s25, %s193
          %s195 = smul.addr %s194, 8
          %s196 = scalar_lea.hbm %s1, %s195
          %s197 = sshll.u32 %s196, 4
          %s198 = int_to_ptr.hbm [resolvable:$true] %s197
          %s199 = sshll.u32 %s190, 4
          %s200 = int_to_ptr.vmem [resolvable:$true] %s199
          %205 = dma.hbm_to_vmem [thread:$0]  %s198, 1024, %s200, %s187, 128, 128, 8
        $region24: #{tpu_custom_call.1} parent=19 // pred_fallthru
          _
        // Predicated region
        $region25: #{tpu_custom_call.1} parent=19 // pred_check
          %p206 = pneg %p111
        $region26: #{tpu_custom_call.1} parent=19 // pred_check_branch
          %208 = sbr.rel (%p206) target = $region28
        $region27: #{tpu_custom_call.1} parent=19 // pred_region
          %s209 = sand.u32 %s16, 1
          %s210 = scalar_lea.sflag [#allocation6], %s209
          %s211 = sand.u32 %s101, 1
          %s212 = scalar_lea.vmem [#allocation7], %s211
          %214 = vsyncadd %s210, 0
          %s215 = sadd.s32 %s25, %s24
          %s216 = scalar_lea.hbm %s2, %s215
          %s218 = sshll.u32 %s216, 4
          %s219 = int_to_ptr.hbm [resolvable:$true] %s218
          %s220 = sshll.u32 %s212, 4
          %s221 = int_to_ptr.vmem [resolvable:$true] %s220
          %223 = dma.hbm_to_vmem [thread:$0]  %s219, 16, %s221, %s210
        $region28: #{tpu_custom_call.1} parent=19 // pred_fallthru
          _
      $region20: #{tpu_custom_call.1} parent=5 // pred_fallthru
        _
      %p224 = scmp.le.s32.totalorder 1, %s16
      %p225 = scmp.lt.s32.totalorder %s16, 4
      %p226 = pnand %p224, %p225
      %p227 = pneg %p226
      // Predicated region
      $region29: #{tpu_custom_call.1} parent=5 // pred_check
        _
      $region30: #{tpu_custom_call.1} parent=5 // pred_check_branch
        %229 = sbr.rel (%p226) target = $region32
      $region31: #{tpu_custom_call.1} parent=5 // pred_region
        %s230 = ssub.s32 %s16, 1
        // Predicated region
        $region33: #{tpu_custom_call.1} parent=31 // pred_check
          %p231 = pneg %p61
        $region34: #{tpu_custom_call.1} parent=31 // pred_check_branch
          %233 = sbr.rel (%p231) target = $region36
        $region35: #{tpu_custom_call.1} parent=31 // pred_region
          %235 = dma.done [#allocation3], 512
        $region36: #{tpu_custom_call.1} parent=31 // pred_fallthru
          _
        %s236 = sand.u32 %s21, 1
        %s237 = scalar_lea.sflag [#allocation6], %s236
        %s238 = sand.u32 %s76, 1
        %s239 = smul.addr %s238, 64
        %s240 = scalar_lea.vmem [#allocation5], %s239
        // Predicated region
        $region37: #{tpu_custom_call.1} parent=31 // pred_check
          %p241 = pneg %p89
        $region38: #{tpu_custom_call.1} parent=31 // pred_check_branch
          %243 = sbr.rel (%p241) target = $region40
        $region39: #{tpu_custom_call.1} parent=31 // pred_region
          %245 = dma.done %s237, 1024
        $region40: #{tpu_custom_call.1} parent=31 // pred_fallthru
          _
        %s246 = sand.u32 %s21, 1
        %s247 = scalar_lea.sflag [#allocation6], %s246
        %s248 = sand.u32 %s104, 1
        %s249 = scalar_lea.vmem [#allocation7], %s248
        // Predicated region
        $region41: #{tpu_custom_call.1} parent=31 // pred_check
          %p250 = pneg %p117
        $region42: #{tpu_custom_call.1} parent=31 // pred_check_branch
          %252 = sbr.rel (%p250) target = $region44
        $region43: #{tpu_custom_call.1} parent=31 // pred_region
          %254 = dma.done %s247, 16
        $region44: #{tpu_custom_call.1} parent=31 // pred_fallthru
          _
        %p255 = pneg %p61
        %p256 = pneg %p58
        %s257 = sand.u32 %s21, 1
        %s258 = scalar_lea.sflag [#allocation6], %s257
        %s259 = sand.u32 %s76, 1
        %s260 = smul.addr %s259, 64
        %s261 = scalar_lea.vmem [#allocation5], %s260
        %p262 = pneg %p89
        %p263 = pneg %p86
        %s264 = sand.u32 %s21, 1
        %s265 = scalar_lea.sflag [#allocation6], %s264
        %s266 = sand.u32 %s104, 1
        %s267 = scalar_lea.vmem [#allocation7], %s266
        %p268 = pneg %p117
        %p269 = pneg %p114
        %p270 = pneg %p147
        %p271 = pneg %p144
        %s272 = sand.u32 %s134, 1
        %s273 = scalar_lea.sflag [#allocation4], %s272
        %s274 = sand.u32 %s134, 1
        %s275 = smul.addr %s274, 32
        %s276 = scalar_lea.vmem [#allocation8], %s275
        %s277 = smul.u32 4, %s26
        %s278 = smul.u32 4, %s26
        %v279 = vld [vmem:[#allocation2] sm:$0xff]
        %v280 = vld [vmem:[#allocation2 + $0x8] sm:$0xff]
        %v281 = vld [vmem:[#allocation2 + $0x10] sm:$0xff]
        %v282 = vld [vmem:[#allocation2 + $0x18] sm:$0xff]
        %v283 = vld [vmem:[%s240] sm:$0xff]
        %v284 = vld [vmem:[%s240 + $0x8] sm:$0xff]
        %v285 = vld [vmem:[%s240 + $0x10] sm:$0xff]
        %v286 = vld [vmem:[%s240 + $0x18] sm:$0xff]
        %v287 = vld [vmem:[%s240 + $0x20] sm:$0xff]
        %v288 = vld [vmem:[%s240 + $0x28] sm:$0xff]
        %v289 = vld [vmem:[%s240 + $0x30] sm:$0xff]
        %v290 = vld [vmem:[%s240 + $0x38] sm:$0xff]
        %v291 = vld [vmem:[%s249] sm:$0x1]
        %v293 = vperm.slane %v291, 0
        %vm295 = vcmask 523264
        %v297 = vsel %vm295, %v279, 0
        %v300 = vsel %vm295, %v280, 0
        %v303 = vsel %vm295, %v281, 0
        %v306 = vsel %vm295, %v282, 0
        %308 = vmatpush.msra.mxu0 0.0
        %309 = vmatpush.msra.mxu0 0.0
        %310 = vmatpush.msra.mxu0 0.0
        %311 = vmatpush.msra.mxu0 0.0
        %312 = vmatpush.msra.mxu0 0.0
        %313 = vmatpush.msra.mxu0 0.0
        %314 = vmatpush.msra.mxu0 0.0
        %315 = vmatpush.msra.mxu0 0.0
        %316 = vmatpush.msra.mxu0 %v290
        %317 = vmatpush.msra.mxu0 %v289
        %318 = vmatpush.msra.mxu0 %v288
        %319 = vmatpush.msra.mxu0 %v287
        %320 = vmatpush.msra.mxu0 %v286
        %321 = vmatpush.msra.mxu0 %v285
        %322 = vmatpush.msra.mxu0 %v284
        %323 = vmatpush.msra.mxu0 %v283
        %324 = vmatmul.f32.gmra.mxu0 %v297
        %v325 = vpop.f32.mrf.mxu0
        %v326 = vadd.f32 %v293, %v325
        %327 = vmatmul.f32.gmra.mxu0 %v300
        %v328 = vpop.f32.mrf.mxu0
        %v329 = vadd.f32 %v293, %v328
        %330 = vmatmul.f32.gmra.mxu0 %v303
        %v331 = vpop.f32.mrf.mxu0
        %v332 = vadd.f32 %v293, %v331
        %333 = vmatmul.f32.gmra.mxu0 %v306
        %v334 = vpop.f32.mrf.mxu0
        %v335 = vadd.f32 %v293, %v334
        %336 = vdwg.mxu0
        %337 = vst.msk [vmem:[%s276] sm:$0xff] %vm295, %v326
        %338 = vst.msk [vmem:[%s276 + $0x8] sm:$0xff] %vm295, %v329
        %339 = vst.msk [vmem:[%s276 + $0x10] sm:$0xff] %vm295, %v332
        %340 = vst.msk [vmem:[%s276 + $0x18] sm:$0xff] %vm295, %v335
        %s341 = sand.u32 %s134, 1
        %s342 = scalar_lea.sflag [#allocation4], %s341
        %s343 = sand.u32 %s134, 1
        %s344 = smul.addr %s343, 32
        %s345 = scalar_lea.vmem [#allocation8], %s344
        // Predicated region
        $region45: #{tpu_custom_call.1} parent=31 // pred_check
          %p346 = pneg %p144
        $region46: #{tpu_custom_call.1} parent=31 // pred_check_branch
          %348 = sbr.rel (%p346) target = $region48
        $region47: #{tpu_custom_call.1} parent=31 // pred_region
          %s349 = smul.u32 4, %s26
          %351 = vsyncadd %s342, 0
          %s352 = sadd.s32 %s28, %s349
          %s353 = smul.addr %s27, 4
          %s354 = sadd.s32 %s352, %s353
          %s355 = smul.addr %s354, 8
          %s356 = scalar_lea.hbm %s3, %s355
          %s357 = sshll.u32 %s345, 4
          %s358 = int_to_ptr.vmem [resolvable:$true] %s357
          %s359 = sshll.u32 %s356, 4
          %s360 = int_to_ptr.hbm [resolvable:$true] %s359
          %365 = dma.vmem_to_hbm [thread:$0]  %s358, 512, %s360, %s342, 128, 128, 8
        $region48: #{tpu_custom_call.1} parent=31 // pred_fallthru
          _
      $region32: #{tpu_custom_call.1} parent=5 // pred_fallthru
        _
      %p366 = scmp.le.s32.totalorder 2, %s16
      // Predicated region
      $region49: #{tpu_custom_call.1} parent=5 // pred_check
        %p367 = pneg %p366
      $region50: #{tpu_custom_call.1} parent=5 // pred_check_branch
        %369 = sbr.rel (%p367) target = $region52
      $region51: #{tpu_custom_call.1} parent=5 // pred_region
        %s370 = ssub.s32 %s16, 2
        // Predicated region
        $region53: #{tpu_custom_call.1} parent=51 // pred_check
          %p371 = pneg %p150
        $region54: #{tpu_custom_call.1} parent=51 // pred_check_branch
          %373 = sbr.rel (%p371) target = $region56
        $region55: #{tpu_custom_call.1} parent=51 // pred_region
          %s374 = sand.u32 %s135, 1
          %s375 = scalar_lea.sflag [#allocation4], %s374
          %s376 = sand.u32 %s135, 1
          %s377 = smul.addr %s376, 32
          %s378 = scalar_lea.vmem [#allocation8], %s377
          %380 = dma.done %s375, 512
        $region56: #{tpu_custom_call.1} parent=51 // pred_fallthru
          _
      $region52: #{tpu_custom_call.1} parent=5 // pred_fallthru
        _
    $region6: #{tpu_custom_call.1} parent=1 // loop_footer
      %s20 = sadd.s32 1, %s16
    $region7: #{tpu_custom_call.1} parent=1 // loop_footer_branch
      %15 = sbr.rel target = $region3
    $region8: #{tpu_custom_call.1} parent=1 // loop_exit
      _
    %381 = vsyncpa [#allocation3], 1
    %s382 = scalar_lea.sflag [#allocation3], 1
    %383 = vsyncpa %s382, 1
    %384 = vsyncpa [#allocation6], 1
    %s385 = scalar_lea.sflag [#allocation6], 1
    %386 = vsyncpa %s385, 1
    %387 = vsyncpa [#allocation4], 1
    %s388 = scalar_lea.sflag [#allocation4], 1
    %389 = vsyncpa %s388, 1

</llo_original>
